<compile_context>
chip_gen: v7x
topology: tpu7x:2x2x1
jax: 0.10.0
libtpu: 0.0.40
codegen_flags: <defaults>
</compile_context>

<pallas_src>
import jax
import jax.numpy as jnp
from jax.experimental import pallas as pl
from jax.experimental.pallas import tpu as pltpu


def _local_mean_pool_kernel(batch_ref, inv_ref, x_ref, out_ref):
    """One (feature-block j, node-tile i) grid step.

    batch_ref: (1, TN)  int32 graph id per node; -1 => masked-out / padding
    inv_ref:   (G, 1)   f32 precomputed 1/count per graph (1.0 for empty graphs)
    x_ref:     (TN, TF) node features at native dtype (bf16 / f32)
    out_ref:   (G, TF)  f32 accumulator (VMEM-resident across the node axis)
    """
    i = pl.program_id(1)                      # node-tile (reduction) axis
    G = out_ref.shape[0]
    TN = batch_ref.shape[1]

    @pl.when(i == 0)
    def _():
        out_ref[...] = jnp.zeros_like(out_ref)

    # Membership matrix regenerated in-register every step (no (G, TN) scratch,
    # no extra VMEM loads competing with the x tile).
    gids = jax.lax.broadcasted_iota(jnp.int32, (G, TN), 0)
    onehot = (gids == batch_ref[...]).astype(x_ref.dtype)   # 0/1 exact in bf16/f32

    # Segment-sum via MXU: (G, TN) @ (TN, TF) -> (G, TF), f32 accumulation.
    # (If strict f32 operand precision is ever required, add precision=HIGHEST.)
    out_ref[...] += jnp.dot(onehot, x_ref[...],
                            preferred_element_type=jnp.float32)

    @pl.when(i == pl.num_programs(1) - 1)
    def _():
        out_ref[...] = out_ref[...] * inv_ref[...]


def _round_up(v, m):
    return ((v + m - 1) // m) * m


def _device_info():
    """Returns (is_v7x, vmem_capacity_bytes) with conservative fallbacks."""
    is_v7 = False
    try:
        kind = (getattr(jax.devices()[0], "device_kind", "") or "").lower()
        is_v7 = ("v7" in kind) or ("7x" in kind)
    except Exception:
        pass
    try:
        vmem_cap = int(pltpu.get_tpu_info().vmem_capacity_bytes)
    except Exception:
        vmem_cap = 64 * 1024 * 1024   # assume the smallest (v7x per-TC) VMEM
    return is_v7, vmem_cap


def local_mean_pool(x, batch, node_mask, num_graphs, *, tile_n=None,
                    zero_masked_rows=False):
    """Pallas implementation of LocalMeanPool.forward.

    x:          [N, F] node features (bf16 / f32; streamed at native dtype)
    batch:      [N]    int graph assignment per node
    node_mask:  [N]    bool mask selecting nodes that participate
    num_graphs: static number of graphs G
    Returns [G, F] float32 per-graph means of masked nodes (0 for empty graphs).
    """
    N, F = x.shape
    x_dtype = x.dtype
    itemsize = jnp.dtype(x_dtype).itemsize

    is_v7, vmem_cap = _device_info()
    budget = int(0.55 * vmem_cap)

    if zero_masked_rows:
        # PyTorch never reads masked-out rows; zeroing protects against
        # non-finite garbage there (0 * NaN would otherwise poison the sums).
        x = jnp.where(node_mask[:, None], x, jnp.zeros((), x_dtype))

    # Fold the node mask into batch ids: masked-out / padding nodes get -1,
    # which never matches a graph id and therefore contributes nothing.
    batch_i32 = batch.astype(jnp.int32)
    batch_m = jnp.where(node_mask, batch_i32, jnp.int32(-1))

    # Pad graph count to the sublane packing of the MXU LHS (onehot in x dtype):
    # 8 for f32, 16 for bf16, 32 for 8-bit.
    packing = max(1, 4 // itemsize) * 8
    g_pad = _round_up(max(num_graphs, packing), packing)

    # Per-graph masked-node counts, computed once in the wrapper (removes the
    # per-step XLU reduce and the count scratch from the kernel).
    cnt = jnp.zeros((g_pad,), jnp.float32).at[batch_i32].add(
        node_mask.astype(jnp.float32))
    inv_cnt = (1.0 / jnp.maximum(cnt, 1.0)).reshape(g_pad, 1)

    # Lane-pad F to a multiple of 128 (dense stores / dense DMA segments).
    f_pad = _round_up(max(F, 128), 128)
    if f_pad != F:
        x = jnp.pad(x, ((0, 0), (0, f_pad - F)))

    # Feature split: single block on single-TC chips (v5e / v6e); exactly two
    # lane-aligned blocks on v7x so both TensorCores stream disjoint columns.
    if is_v7 and f_pad >= 256 and f_pad % 256 == 0:
        tf = f_pad // 2
    else:
        tf = f_pad

    # Node tile: as big as the VMEM budget allows (fewer grid steps => less
    # fixed per-step overhead on an HBM-bound kernel).
    n_round = _round_up(N, 128)
    if tile_n is None:
        tile_n = 2048 if itemsize <= 2 else 1024
    tn = max(128, (min(int(tile_n), n_round) // 128) * 128)

    def vmem_need(tn_, tf_):
        return (2 * tn_ * tf_ * itemsize       # x tiles (double-buffered)
                + 2 * tn_ * 4                  # batch rows (double-buffered)
                + 2 * g_pad * tf_ * 4          # resident out block + writeback
                + 2 * g_pad * 4                # 1/count block
                + (1 << 20))                   # Mosaic internal scratch headroom

    while vmem_need(tn, tf) > budget and tn > 128:
        tn = max(128, (tn // 2 // 128) * 128)
    while (vmem_need(tn, tf) > budget and tf > 128
           and (tf // 2) % 128 == 0 and f_pad % (tf // 2) == 0):
        tf //= 2

    n_pad = pl.cdiv(N, tn) * tn
    if n_pad != N:
        x = jnp.pad(x, ((0, n_pad - N), (0, 0)))
        batch_m = jnp.pad(batch_m, (0, n_pad - N), constant_values=-1)
    batch2 = batch_m.reshape(1, n_pad)

    grid = (f_pad // tf, n_pad // tn)

    need = vmem_need(tn, tf)
    vmem_limit = int(min(max(2 * need, 16 * 1024 * 1024), int(0.6 * vmem_cap)))
    vmem_limit = max(vmem_limit, need + (2 << 20))

    out = pl.pallas_call(
        _local_mean_pool_kernel,
        out_shape=jax.ShapeDtypeStruct((g_pad, f_pad), jnp.float32),
        grid_spec=pltpu.PrefetchScalarGridSpec(
            num_scalar_prefetch=0,
            grid=grid,
            in_specs=[
                pl.BlockSpec((1, tn), lambda j, i: (0, i)),       # batch ids
                pl.BlockSpec((g_pad, 1), lambda j, i: (0, 0)),    # 1/counts
                # x tile; if a v7x profile shows exposed DMA after enlarging
                # tiles, add pipeline_mode=pl.Buffered(3) to this spec only.
                pl.BlockSpec((tn, tf), lambda j, i: (i, j)),
            ],
            out_specs=pl.BlockSpec((g_pad, tf), lambda j, i: (0, j)),
        ),
        compiler_params=pltpu.CompilerParams(
            dimension_semantics=("parallel", "arbitrary"),
            vmem_limit_bytes=vmem_limit),
    )(batch2, inv_cnt, x)

    return out[:num_graphs, :F]


def _reference(x, batch, node_mask, num_graphs):
    # Pure-JAX reference of masked global_mean_pool.
    m = node_mask.astype(jnp.float32)[:, None]                     # (N, 1)
    onehot = jax.nn.one_hot(batch, num_graphs, dtype=jnp.float32)  # (N, G)
    sums = (onehot * m).T @ x.astype(jnp.float32)                  # (G, F)
    cnts = jnp.sum(onehot * m, axis=0, keepdims=True).T            # (G, 1)
    return sums / jnp.maximum(cnts, 1.0)


if __name__ == "__main__":
    key = jax.random.PRNGKey(0)
    k_x, k_m = jax.random.split(key)

    # Small shapes: exercise N-padding, F-lane-padding (F < 128) and G-padding.
    N, F, G = 300, 32, 5
    x = jax.random.normal(k_x, (N, F), dtype=jnp.float32)
    batch = jnp.minimum(jnp.arange(N, dtype=jnp.int32) // ((N + G - 1) // G),
                        G - 1)                                     # graph ids
    node_mask = jax.random.bernoulli(k_m, p=0.5, shape=(N,))       # bool mask

    out = jax.block_until_ready(local_mean_pool(x, batch, node_mask, G))
    ref = _reference(x, batch, node_mask, G)
    assert out.shape == (G, F)
    assert jnp.allclose(out, ref, atol=1e-5, rtol=1e-5), "f32 mismatch vs reference"

    # Native-dtype (bf16) streaming path: x stays bf16 in HBM/VMEM, f32 acc.
    x_bf16 = x.astype(jnp.bfloat16)
    out_bf = jax.block_until_ready(local_mean_pool(x_bf16, batch, node_mask, G))
    ref_bf = _reference(x_bf16.astype(jnp.float32), batch, node_mask, G)
    assert jnp.allclose(out_bf, ref_bf, atol=1e-3, rtol=1e-3), "bf16 mismatch vs reference"

    print("KERNEL_OK")
</pallas_src>

<mosaic_0001>
module attributes {stable_mosaic.version = 11 : i64} {
  func.func @_local_mean_pool_kernel(%arg0: i32, %arg1: i32, %arg2: memref<1x384xi32, #tpu.memory_space<vmem>>, %arg3: memref<8x1xf32, #tpu.memory_space<vmem>>, %arg4: memref<384x128xf32, #tpu.memory_space<vmem>>, %arg5: memref<8x128xf32, #tpu.memory_space<vmem>>) attributes {dimension_semantics = [#tpu.dimension_semantics<parallel>, #tpu.dimension_semantics<arbitrary>], iteration_bounds = array<i64: 1, 1>, scalar_prefetch = 0 : i64, scratch_operands = 0 : i64, tpu.core_type = #tpu.core_type<tc>, window_params = [{transform_indices = @transform_0, window_bounds = array<i64: 1, 384>}, {pipeline_mode = #tpu.pipeline_mode<synchronous>, transform_indices = @transform_1, window_bounds = array<i64: 8, 1>}, {transform_indices = @transform_2, window_bounds = array<i64: 384, 128>}, {transform_indices = @transform_3, window_bounds = array<i64: 8, 128>}]} {
    %c0_i32 = arith.constant 0 : i32
    %0 = arith.cmpi eq, %arg1, %c0_i32 : i32
    %1 = arith.extui %0 : i1 to i32
    %c0_i32_0 = arith.constant 0 : i32
    %2 = arith.cmpi ne, %1, %c0_i32_0 : i32
    scf.if %2 {
      %cst_10 = arith.constant 0.000000e+00 : f32
      %17 = vector.broadcast %cst_10 : f32 to vector<8x128xf32>
      %c0_11 = arith.constant 0 : index
      %c0_12 = arith.constant 0 : index
      %18 = vector.load %arg5[%c0_11, %c0_12] : memref<8x128xf32, #tpu.memory_space<vmem>>, vector<8x128xf32>
      tpu.vector_store %arg5[%c0_11, %c0_12], %17 {strides = array<i32>} : memref<8x128xf32, #tpu.memory_space<vmem>>, vector<8x128xf32>,
    } else {
    }
    %3 = tpu.iota {dimensions = array<i32: 0>} : vector<8x384xi32>
    %c0 = arith.constant 0 : index
    %c0_1 = arith.constant 0 : index
    %4 = vector.load %arg2[%c0, %c0_1] : memref<1x384xi32, #tpu.memory_space<vmem>>, vector<1x384xi32>
    %5 = vector.broadcast %4 : vector<1x384xi32> to vector<8x384xi32>
    %6 = arith.cmpi eq, %3, %5 : vector<8x384xi32>
    %7 = arith.extui %6 : vector<8x384xi1> to vector<8x384xi32>
    %8 = arith.sitofp %7 : vector<8x384xi32> to vector<8x384xf32>
    %c0_2 = arith.constant 0 : index
    %c0_3 = arith.constant 0 : index
    %9 = vector.load %arg5[%c0_2, %c0_3] : memref<8x128xf32, #tpu.memory_space<vmem>>, vector<8x128xf32>
    %c0_4 = arith.constant 0 : index
    %c0_5 = arith.constant 0 : index
    %10 = vector.load %arg4[%c0_4, %c0_5] : memref<384x128xf32, #tpu.memory_space<vmem>>, vector<384x128xf32>
    %cst = arith.constant dense<0.000000e+00> : vector<8x128xf32>
    %11 = tpu.matmul %8, %10, %cst {dimension_numbers = #tpu.dot_dimension_numbers<[1], [0], [0], [1], [0, 0, 1, 1], [], []>} : vector<8x384xf32>, vector<384x128xf32>, vector<8x128xf32> -> vector<8x128xf32>
    %12 = arith.addf %9, %11 : vector<8x128xf32>
    %c0_6 = arith.constant 0 : index
    %c0_7 = arith.constant 0 : index
    %13 = vector.load %arg5[%c0_6, %c0_7] : memref<8x128xf32, #tpu.memory_space<vmem>>, vector<8x128xf32>
    tpu.vector_store %arg5[%c0_6, %c0_7], %12 {strides = array<i32>} : memref<8x128xf32, #tpu.memory_space<vmem>>, vector<8x128xf32>,
    %c0_i32_8 = arith.constant 0 : i32
    %14 = arith.cmpi eq, %arg1, %c0_i32_8 : i32
    %15 = arith.extui %14 : i1 to i32
    %c0_i32_9 = arith.constant 0 : i32
    %16 = arith.cmpi ne, %15, %c0_i32_9 : i32
    scf.if %16 {
      %c0_10 = arith.constant 0 : index
      %c0_11 = arith.constant 0 : index
      %17 = vector.load %arg5[%c0_10, %c0_11] : memref<8x128xf32, #tpu.memory_space<vmem>>, vector<8x128xf32>
      %c0_12 = arith.constant 0 : index
      %c0_13 = arith.constant 0 : index
      %18 = vector.load %arg3[%c0_12, %c0_13] : memref<8x1xf32, #tpu.memory_space<vmem>>, vector<8x1xf32>
      %19 = vector.broadcast %18 : vector<8x1xf32> to vector<8x128xf32>
      %20 = arith.mulf %17, %19 : vector<8x128xf32>
      %c0_14 = arith.constant 0 : index
      %c0_15 = arith.constant 0 : index
      %21 = vector.load %arg5[%c0_14, %c0_15] : memref<8x128xf32, #tpu.memory_space<vmem>>, vector<8x128xf32>
      tpu.vector_store %arg5[%c0_14, %c0_15], %20 {strides = array<i32>} : memref<8x128xf32, #tpu.memory_space<vmem>>, vector<8x128xf32>,
    } else {
    }
    return
  }
  func.func @transform_0(%arg0: i32, %arg1: i32) -> (i32, i32) {
    %c0_i32 = arith.constant 0 : i32
    %c0_i32_0 = arith.constant 0 : i32
    return %c0_i32, %arg1 : i32, i32
  }
  func.func @transform_1(%arg0: i32, %arg1: i32) -> (i32, i32) {
    %c0_i32 = arith.constant 0 : i32
    %c0_i32_0 = arith.constant 0 : i32
    %c0_i32_1 = arith.constant 0 : i32
    return %c0_i32, %c0_i32_0 : i32, i32
  }
  func.func @transform_2(%arg0: i32, %arg1: i32) -> (i32, i32) {
    %c0_i32 = arith.constant 0 : i32
    return %arg1, %arg0 : i32, i32
  }
  func.func @transform_3(%arg0: i32, %arg1: i32) -> (i32, i32) {
    %c0_i32 = arith.constant 0 : i32
    %c0_i32_0 = arith.constant 0 : i32
    return %c0_i32, %arg0 : i32, i32
  }
}

</mosaic_0001>

<llo_original>
// kernel: tpu_custom_call.1
$region0: #{tpu_custom_call.1}
  #allocation0 [shape = 'u32[]', space=smem, size = 0x4, offset = 0x4, fixed_abs, tag = 'smem constant byte address 0x4 - core index']
  #allocation1 [shape = 'u32[144,128]{1,0:T(1,128)}', space=vmem, size = 0x12000, scoped, tag = 'internal scratch']
  %s0 = inlined_call_operand.vmem [shape: s32[1,384], index: 0, kind: input, shape index: {}]
  %s1 = inlined_call_operand.vmem [shape: f32[8,1], index: 1, kind: input, shape index: {}]
  %s2 = inlined_call_operand.hbm [shape: f32[384,128], index: 2, kind: input, shape index: {}]
  %s3 = inlined_call_operand.hbm [shape: f32[8,128], index: 3, kind: output, shape index: {}]
  %s4 = sld [smem:[#allocation0]]
  $region34: #{tpu_custom_call.1} parent=0
    _
  %s6 = ssub.s32 1, %s4
  %s7 = scalar_select 0, %s6, %s4
  $region1: #{tpu_custom_call.1} parent=0
    #allocation2 [shape = 'u8[196608]{0}', space=vmem, size = 0x30000, scoped, tag = 'input window, operand 2, single buffered']
    #allocation3 [shape = 's32[1]{0}', space=sflag, size = 0x4, scoped, tag = 'scoped memory for tpu_custom_call.1']
    #allocation4 [shape = 's32[1]{0}', space=sflag, size = 0x4, scoped, tag = 'scoped memory for tpu_custom_call.1']
    #allocation5 [shape = 'u8[4096]{0}', space=vmem, size = 0x1000, scoped, tag = 'output window, operand 0, single buffered']
    %8 = vsyncpa [#allocation3], 0
    %9 = vsyncpa [#allocation4], 0
    // Predicated region
    $region2: #{tpu_custom_call.1} parent=1 // pred_check
      _
    $region3: #{tpu_custom_call.1} parent=1 // pred_check_branch
      %11 = sbr.rel (0) target = $region5
    $region4: #{tpu_custom_call.1} parent=1 // pred_region
      _
    $region5: #{tpu_custom_call.1} parent=1 // pred_fallthru
      _
    // Predicated region
    $region6: #{tpu_custom_call.1} parent=1 // pred_check
      _
    $region7: #{tpu_custom_call.1} parent=1 // pred_check_branch
      %13 = sbr.rel (0) target = $region9
    $region8: #{tpu_custom_call.1} parent=1 // pred_region
      _
    $region9: #{tpu_custom_call.1} parent=1 // pred_fallthru
      _
    // Predicated region
    $region10: #{tpu_custom_call.1} parent=1 // pred_check
      _
    $region11: #{tpu_custom_call.1} parent=1 // pred_check_branch
      %15 = sbr.rel (0) target = $region13
    $region12: #{tpu_custom_call.1} parent=1 // pred_region
      %s17 = ssub.s32 6144, 6144
      %18 = vsyncadd [#allocation3], %s17
      %s19 = sshll.u32 [#allocation2], 4
      %s20 = int_to_ptr.vmem [resolvable:$true] %s19
      %25 = dma.hbm_to_vmem [thread:$0]  %s2, 6144, %s20, [#allocation3], 128, 128, 8
    $region13: #{tpu_custom_call.1} parent=1 // pred_fallthru
      _
    // Predicated region
    $region14: #{tpu_custom_call.1} parent=1 // pred_check
      _
    $region15: #{tpu_custom_call.1} parent=1 // pred_check_branch
      %27 = sbr.rel (0) target = $region17
    $region16: #{tpu_custom_call.1} parent=1 // pred_region
      %28 = dma.done [#allocation3], 6144
    $region17: #{tpu_custom_call.1} parent=1 // pred_fallthru
      _
    %p29 = scmp.eq.s32.totalorder 0, 0
    // Predicated region
    $region18: #{tpu_custom_call.1} parent=1 // pred_check
      %p30 = pneg %p29
    $region19: #{tpu_custom_call.1} parent=1 // pred_check_branch
      %32 = sbr.rel (%p30) target = $region21
    $region20: #{tpu_custom_call.1} parent=1 // pred_region
      %33 = vst [vmem:[#allocation5] sm:$0xff] 0.0
    $region21: #{tpu_custom_call.1} parent=1 // pred_fallthru
      _
    %v34 = vlaneseq
    %v35 = vshrl.u32 %v34, 7
    %v36 = vld [vmem:[%s0] sm:$0x7]
    %v37 = vlaneseq
    %v38 = vshrl.u32 %v37, 7
    %v39 = vsub.s32 0, %v38
    %v40 = vrot.slane %v36, %v39
    %v41 = vlaneseq
    %v42 = vshrl.u32 %v41, 7
    %v43 = vsub.s32 1, %v42
    %v44 = vrot.slane %v36, %v43
    %v45 = vlaneseq
    %v46 = vshrl.u32 %v45, 7
    %v47 = vsub.s32 2, %v46
    %v48 = vrot.slane %v36, %v47
    %vm49 = vcmp.eq.s32.totalorder %v35, %v40
    %vm50 = vcmp.eq.s32.totalorder %v35, %v44
    %vm51 = vcmp.eq.s32.totalorder %v35, %v48
    %v52 = vsel %vm49, 1, 0
    %v53 = vsel %vm50, 1, 0
    %v54 = vsel %vm51, 1, 0
    %v55 = vcvt.s32.f32 %v52
    %v56 = vcvt.s32.f32 %v53
    %v57 = vcvt.s32.f32 %v54
    %v58 = vld [vmem:[#allocation5] sm:$0xff]
    %v59 = vld [vmem:[#allocation2] sm:$0xff]
    %v60 = vld [vmem:[#allocation2 + $0x8] sm:$0xff]
    %v61 = vld [vmem:[#allocation2 + $0x10] sm:$0xff]
    %v62 = vld [vmem:[#allocation2 + $0x18] sm:$0xff]
    %v63 = vld [vmem:[#allocation2 + $0x20] sm:$0xff]
    %v64 = vld [vmem:[#allocation2 + $0x28] sm:$0xff]
    %v65 = vld [vmem:[#allocation2 + $0x30] sm:$0xff]
    %v66 = vld [vmem:[#allocation2 + $0x38] sm:$0xff]
    %v67 = vld [vmem:[#allocation2 + $0x40] sm:$0xff]
    %v68 = vld [vmem:[#allocation2 + $0x48] sm:$0xff]
    %v69 = vld [vmem:[#allocation2 + $0x50] sm:$0xff]
    %v70 = vld [vmem:[#allocation2 + $0x58] sm:$0xff]
    %v71 = vld [vmem:[#allocation2 + $0x60] sm:$0xff]
    %v72 = vld [vmem:[#allocation2 + $0x68] sm:$0xff]
    %v73 = vld [vmem:[#allocation2 + $0x70] sm:$0xff]
    %v74 = vld [vmem:[#allocation2 + $0x78] sm:$0xff]
    %v75 = vld [vmem:[#allocation2 + $0x80] sm:$0xff]
    %v76 = vld [vmem:[#allocation2 + $0x88] sm:$0xff]
    %v77 = vld [vmem:[#allocation2 + $0x90] sm:$0xff]
    %v78 = vld [vmem:[#allocation2 + $0x98] sm:$0xff]
    %v79 = vld [vmem:[#allocation2 + $0xa0] sm:$0xff]
    %v80 = vld [vmem:[#allocation2 + $0xa8] sm:$0xff]
    %v81 = vld [vmem:[#allocation2 + $0xb0] sm:$0xff]
    %v82 = vld [vmem:[#allocation2 + $0xb8] sm:$0xff]
    %v83 = vld [vmem:[#allocation2 + $0xc0] sm:$0xff]
    %v84 = vld [vmem:[#allocation2 + $0xc8] sm:$0xff]
    %v85 = vld [vmem:[#allocation2 + $0xd0] sm:$0xff]
    %v86 = vld [vmem:[#allocation2 + $0xd8] sm:$0xff]
    %v87 = vld [vmem:[#allocation2 + $0xe0] sm:$0xff]
    %v88 = vld [vmem:[#allocation2 + $0xe8] sm:$0xff]
    %v89 = vld [vmem:[#allocation2 + $0xf0] sm:$0xff]
    %v90 = vld [vmem:[#allocation2 + $0xf8] sm:$0xff]
    %v91 = vld [vmem:[#allocation2 + $0x100] sm:$0xff]
    %v92 = vld [vmem:[#allocation2 + $0x108] sm:$0xff]
    %v93 = vld [vmem:[#allocation2 + $0x110] sm:$0xff]
    %v94 = vld [vmem:[#allocation2 + $0x118] sm:$0xff]
    %v95 = vld [vmem:[#allocation2 + $0x120] sm:$0xff]
    %v96 = vld [vmem:[#allocation2 + $0x128] sm:$0xff]
    %v97 = vld [vmem:[#allocation2 + $0x130] sm:$0xff]
    %v98 = vld [vmem:[#allocation2 + $0x138] sm:$0xff]
    %v99 = vld [vmem:[#allocation2 + $0x140] sm:$0xff]
    %v100 = vld [vmem:[#allocation2 + $0x148] sm:$0xff]
    %v101 = vld [vmem:[#allocation2 + $0x150] sm:$0xff]
    %v102 = vld [vmem:[#allocation2 + $0x158] sm:$0xff]
    %v103 = vld [vmem:[#allocation2 + $0x160] sm:$0xff]
    %v104 = vld [vmem:[#allocation2 + $0x168] sm:$0xff]
    %v105 = vld [vmem:[#allocation2 + $0x170] sm:$0xff]
    %v106 = vld [vmem:[#allocation2 + $0x178] sm:$0xff]
    %107 = vmatprep.subr.mxu0 0.0
    %108 = vmatpush1.msra.mxu0 %v59
    %109 = vmatprep.subr.mxu0 0.0
    %110 = vmatpush1.msra.mxu0 %v60
    %111 = vmatprep.subr.mxu0 0.0
    %112 = vmatpush1.msra.mxu0 %v61
    %113 = vmatprep.subr.mxu0 0.0
    %114 = vmatpush1.msra.mxu0 %v62
    %115 = vmatprep.subr.mxu0 0.0
    %116 = vmatpush1.msra.mxu0 %v63
    %117 = vmatprep.subr.mxu0 0.0
    %118 = vmatpush1.msra.mxu0 %v64
    %119 = vmatprep.subr.mxu0 0.0
    %120 = vmatpush1.msra.mxu0 %v65
    %121 = vmatprep.subr.mxu0 0.0
    %122 = vmatpush1.msra.mxu0 %v66
    %123 = vmatprep.subr.mxu0 0.0
    %124 = vmatpush1.msra.mxu0 %v67
    %125 = vmatprep.subr.mxu0 0.0
    %126 = vmatpush1.msra.mxu0 %v68
    %127 = vmatprep.subr.mxu0 0.0
    %128 = vmatpush1.msra.mxu0 %v69
    %129 = vmatprep.subr.mxu0 0.0
    %130 = vmatpush1.msra.mxu0 %v70
    %131 = vmatprep.subr.mxu0 0.0
    %132 = vmatpush1.msra.mxu0 %v71
    %133 = vmatprep.subr.mxu0 0.0
    %134 = vmatpush1.msra.mxu0 %v72
    %135 = vmatprep.subr.mxu0 0.0
    %136 = vmatpush1.msra.mxu0 %v73
    %137 = vmatprep.subr.mxu0 0.0
    %138 = vmatpush1.msra.mxu0 %v74
    %139 = vmatprep.subr.mxu0 0.0
    %140 = vmatpush1.msra.mxu0 %v75
    %141 = vmatprep.subr.mxu0 0.0
    %142 = vmatpush1.msra.mxu0 %v76
    %143 = vmatprep.subr.mxu0 0.0
    %144 = vmatpush1.msra.mxu0 %v77
    %145 = vmatprep.subr.mxu0 0.0
    %146 = vmatpush1.msra.mxu0 %v78
    %147 = vmatprep.subr.mxu0 0.0
    %148 = vmatpush1.msra.mxu0 %v79
    %149 = vmatprep.subr.mxu0 0.0
    %150 = vmatpush1.msra.mxu0 %v80
    %151 = vmatprep.subr.mxu0 0.0
    %152 = vmatpush1.msra.mxu0 %v81
    %153 = vmatprep.subr.mxu0 0.0
    %154 = vmatpush1.msra.mxu0 %v82
    %155 = vmatprep.subr.mxu0 0.0
    %156 = vmatpush1.msra.mxu0 %v83
    %157 = vmatprep.subr.mxu0 0.0
    %158 = vmatpush1.msra.mxu0 %v84
    %159 = vmatprep.subr.mxu0 0.0
    %160 = vmatpush1.msra.mxu0 %v85
    %161 = vmatprep.subr.mxu0 0.0
    %162 = vmatpush1.msra.mxu0 %v86
    %163 = vmatprep.subr.mxu0 0.0
    %164 = vmatpush1.msra.mxu0 %v87
    %165 = vmatprep.subr.mxu0 0.0
    %166 = vmatpush1.msra.mxu0 %v88
    %167 = vmatprep.subr.mxu0 0.0
    %168 = vmatpush1.msra.mxu0 %v89
    %169 = vmatprep.subr.mxu0 0.0
    %170 = vmatpush1.msra.mxu0 %v90
    %171 = vmatprep.mubr.f32.mxu0 %v56
    %172 = vmatmul.mubr.f32.gmra.mrb[0].mxu0 %v55
    %v173 = vpop.f32.mrb[0].mxu0
    %v174 = vadd.f32 0.0, %v173
    %v175 = vpop.f32.mrb[0].mxu0
    %176 = vdwg.mxu0
    %177 = vmatprep.subr.mxu0 0.0
    %178 = vmatpush1.msra.mxu0 %v91
    %179 = vmatprep.subr.mxu0 0.0
    %180 = vmatpush1.msra.mxu0 %v92
    %181 = vmatprep.subr.mxu0 0.0
    %182 = vmatpush1.msra.mxu0 %v93
    %183 = vmatprep.subr.mxu0 0.0
    %184 = vmatpush1.msra.mxu0 %v94
    %185 = vmatprep.subr.mxu0 0.0
    %186 = vmatpush1.msra.mxu0 %v95
    %187 = vmatprep.subr.mxu0 0.0
    %188 = vmatpush1.msra.mxu0 %v96
    %189 = vmatprep.subr.mxu0 0.0
    %190 = vmatpush1.msra.mxu0 %v97
    %191 = vmatprep.subr.mxu0 0.0
    %192 = vmatpush1.msra.mxu0 %v98
    %193 = vmatprep.subr.mxu0 0.0
    %194 = vmatpush1.msra.mxu0 %v99
    %195 = vmatprep.subr.mxu0 0.0
    %196 = vmatpush1.msra.mxu0 %v100
    %197 = vmatprep.subr.mxu0 0.0
    %198 = vmatpush1.msra.mxu0 %v101
    %199 = vmatprep.subr.mxu0 0.0
    %200 = vmatpush1.msra.mxu0 %v102
    %201 = vmatprep.subr.mxu0 0.0
    %202 = vmatpush1.msra.mxu0 %v103
    %203 = vmatprep.subr.mxu0 0.0
    %204 = vmatpush1.msra.mxu0 %v104
    %205 = vmatprep.subr.mxu0 0.0
    %206 = vmatpush1.msra.mxu0 %v105
    %207 = vmatprep.subr.mxu0 0.0
    %208 = vmatpush1.msra.mxu0 %v106
    %209 = vmatprep.subr.mxu0 0.0
    %210 = vmatpush1.msra.mxu0 0.0
    %211 = vmatprep.subr.mxu0 0.0
    %212 = vmatpush1.msra.mxu0 0.0
    %213 = vmatprep.subr.mxu0 0.0
    %214 = vmatpush1.msra.mxu0 0.0
    %215 = vmatprep.subr.mxu0 0.0
    %216 = vmatpush1.msra.mxu0 0.0
    %217 = vmatprep.subr.mxu0 0.0
    %218 = vmatpush1.msra.mxu0 0.0
    %219 = vmatprep.subr.mxu0 0.0
    %220 = vmatpush1.msra.mxu0 0.0
    %221 = vmatprep.subr.mxu0 0.0
    %222 = vmatpush1.msra.mxu0 0.0
    %223 = vmatprep.subr.mxu0 0.0
    %224 = vmatpush1.msra.mxu0 0.0
    %225 = vmatprep.subr.mxu0 0.0
    %226 = vmatpush1.msra.mxu0 0.0
    %227 = vmatprep.subr.mxu0 0.0
    %228 = vmatpush1.msra.mxu0 0.0
    %229 = vmatprep.subr.mxu0 0.0
    %230 = vmatpush1.msra.mxu0 0.0
    %231 = vmatprep.subr.mxu0 0.0
    %232 = vmatpush1.msra.mxu0 0.0
    %233 = vmatprep.subr.mxu0 0.0
    %234 = vmatpush1.msra.mxu0 0.0
    %235 = vmatprep.subr.mxu0 0.0
    %236 = vmatpush1.msra.mxu0 0.0
    %237 = vmatprep.subr.mxu0 0.0
    %238 = vmatpush1.msra.mxu0 0.0
    %239 = vmatprep.subr.mxu0 0.0
    %240 = vmatpush1.msra.mxu0 0.0
    %241 = vmatprep.mubr.f32.mxu0 0.0
    %242 = vmatmul.mubr.f32.gmra.mrb[0].mxu0 %v57
    %v243 = vpop.f32.mrb[0].mxu0
    %v244 = vadd.f32 %v174, %v243
    %v245 = vpop.f32.mrb[0].mxu0
    %246 = vdwg.mxu0
    %v247 = vadd.f32 %v58, %v244
    %248 = vst [vmem:[#allocation5] sm:$0xff] %v247
    // Predicated region
    $region22: #{tpu_custom_call.1} parent=1 // pred_check
      %p249 = pneg %p29
    $region23: #{tpu_custom_call.1} parent=1 // pred_check_branch
      %251 = sbr.rel (%p249) target = $region25
    $region24: #{tpu_custom_call.1} parent=1 // pred_region
      %v252 = vld [vmem:[#allocation5] sm:$0xff]
      %v253 = vld [vmem:[%s1] sm:$0xff]
      %255 = vset.pattern.permute.xlu0 0
      %256 = vperm.xlu0 %255, %v253
      %v257 = vpop.permute.xlu0 %256
      %v259 = vmul.f32 %v252, %v257
      %260 = vst [vmem:[#allocation5] sm:$0xff] %v259
    $region25: #{tpu_custom_call.1} parent=1 // pred_fallthru
      _
    // Predicated region
    $region26: #{tpu_custom_call.1} parent=1 // pred_check
      _
    $region27: #{tpu_custom_call.1} parent=1 // pred_check_branch
      %262 = sbr.rel (0) target = $region29
    $region28: #{tpu_custom_call.1} parent=1 // pred_region
      %s264 = ssub.s32 128, 128
      %265 = vsyncadd [#allocation4], %s264
      %s267 = sshll.u32 [#allocation5], 4
      %s268 = int_to_ptr.vmem [resolvable:$true] %s267
      %270 = dma.vmem_to_hbm [thread:$0]  %s268, 128, %s3, [#allocation4]
    $region29: #{tpu_custom_call.1} parent=1 // pred_fallthru
      _
    // Predicated region
    $region30: #{tpu_custom_call.1} parent=1 // pred_check
      _
    $region31: #{tpu_custom_call.1} parent=1 // pred_check_branch
      %272 = sbr.rel (0) target = $region33
    $region32: #{tpu_custom_call.1} parent=1 // pred_region
      %273 = dma.done [#allocation4], 128
    $region33: #{tpu_custom_call.1} parent=1 // pred_fallthru
      _
    %274 = vsyncpa [#allocation3], 1
    %275 = vsyncpa [#allocation4], 1

</llo_original>
